<compile_context>
chip_gen: v7x
topology: tpu7x:2x2x1
jax: 0.10.0
libtpu: 0.0.40
codegen_flags: <defaults>
</compile_context>

<pallas_src>
import jax
import jax.numpy as jnp
from jax.experimental import pallas as pl
from jax.experimental.pallas import tpu as pltpu

LANE = 128


def _round_up(n, m):
    return ((n + m - 1) // m) * m


def init_params(key, input_size, hidden_size, hidden_layers, output_size=1):
    """nn.Linear-style init; returns (packed buffers for the kernel, raw layer list)."""
    assert hidden_layers >= 1
    # TODO(synk): the lane-compacted output path assumes a single logit column
    # (output_size == 1), which is the BinaryClassifier default.
    assert output_size == 1

    sizes = []
    for i in range(hidden_layers):
        sizes.append((input_size if i == 0 else hidden_size, hidden_size))
    sizes.append((hidden_size, output_size))

    layers = []
    for (in_f, out_f) in sizes:
        key, kw, kb = jax.random.split(key, 3)
        bound = 1.0 / (in_f ** 0.5)  # nn.Linear default init scale
        w = jax.random.uniform(kw, (in_f, out_f), jnp.float32, -bound, bound)
        b = jax.random.uniform(kb, (out_f,), jnp.float32, -bound, bound)
        # Round weights to bf16 once so kernel and reference use identical values.
        layers.append((w.astype(jnp.bfloat16).astype(jnp.float32), b))

    D = _round_up(hidden_size, LANE)
    num_hidden = hidden_layers

    # Layer 0 weight keeps its unpadded input dim; output dim padded to D (zeros).
    w_first = jnp.zeros((input_size, D), jnp.float32).at[:, :hidden_size].set(layers[0][0])

    # Hidden-layer biases (incl. layer 0) and hidden->hidden weights, zero padded.
    b_hid = jnp.zeros((num_hidden, 1, D), jnp.float32)
    b_hid = b_hid.at[0, 0, :hidden_size].set(layers[0][1])
    w_hid = jnp.zeros((max(num_hidden - 1, 0), D, D), jnp.float32)
    for l in range(1, num_hidden):
        w_hid = w_hid.at[l - 1, :hidden_size, :hidden_size].set(layers[l][0])
        b_hid = b_hid.at[l, 0, :hidden_size].set(layers[l][1])

    # Last layer: the single real output column, broadcast to all 128 lanes so the
    # MXU matmul leaves each row's logit replicated in every lane.
    w_last_col = jnp.zeros((D,), jnp.float32).at[:hidden_size].set(layers[-1][0][:, 0])
    w_last_b = jnp.broadcast_to(w_last_col[:, None], (D, LANE))
    b_last = layers[-1][1].reshape((1,))  # (1,) f32 scalar, lives in SMEM

    packed = dict(
        w_first=w_first.astype(jnp.bfloat16),
        w_hid=w_hid.astype(jnp.bfloat16),
        b_hid=b_hid,
        w_last_b=w_last_b.astype(jnp.bfloat16),
        b_last=b_last,
        input_size=input_size,
        hidden_size=hidden_size,
        num_hidden=num_hidden,
        output_size=output_size,
        D=D,
    )
    return packed, layers


def _make_mlp_kernel(num_hidden, tb, D):
    n_rows = tb // LANE

    def kernel(*refs):
        if num_hidden > 1:
            (x_ref, w_first_ref, w_hid_ref, b_hid_ref,
             w_last_ref, b_last_ref, o_ref) = refs
        else:
            (x_ref, w_first_ref, b_hid_ref,
             w_last_ref, b_last_ref, o_ref) = refs
            w_hid_ref = None

        # Layer 0: (tb, input_size) @ (input_size, D) on the MXU, f32 accumulation.
        h = jnp.dot(x_ref[...], w_first_ref[...],
                    preferred_element_type=jnp.float32)
        h = jnp.maximum(h + b_hid_ref[0], 0.0)

        # Remaining hidden layers, unrolled; activations never leave VMEM/vregs.
        for l in range(1, num_hidden):
            h = jnp.dot(h.astype(jnp.bfloat16), w_hid_ref[l - 1],
                        preferred_element_type=jnp.float32)
            h = jnp.maximum(h + b_hid_ref[l], 0.0)

        # Final layer: w_last is the single logit column broadcast across lanes,
        # so y[r, :] holds row r's logit replicated in every lane.
        y = jnp.dot(h.astype(jnp.bfloat16), w_last_ref[...],
                    preferred_element_type=jnp.float32)          # (tb, 128) f32
        y3 = y.reshape(n_rows, LANE, LANE)                       # leading-dim split (layout no-op)

        # Lane-dense gather: out[i, c] = y3[i, c, c] via identity mask + sublane
        # reduction (reduction over axis=1 keeps results in their lanes).
        row = jax.lax.broadcasted_iota(jnp.int32, (LANE, LANE), 0)
        col = jax.lax.broadcasted_iota(jnp.int32, (LANE, LANE), 1)
        eye = (row == col).astype(jnp.float32)
        logits = jnp.sum(y3 * eye, axis=1) + b_last_ref[0]       # (n_rows, 128) f32

        o_ref[0] = jax.nn.sigmoid(logits)

    return kernel


def binary_classifier_forward(x, params, *, batch_tile=2048):
    """Forward pass semantically identical to BinaryClassifier.forward."""
    batch, in_features = x.shape
    assert in_features == params["input_size"]
    num_hidden = params["num_hidden"]
    D = params["D"]
    output_size = params["output_size"]

    # Batch tiling: pad to a 128-row quantum (not a full tile), and use >= 2 grid
    # steps whenever possible so v7x's two TensorCores both get work.
    B128 = _round_up(max(batch, 1), LANE)
    num_tiles = max(pl.cdiv(B128, batch_tile), 2 if B128 >= 2 * LANE else 1)
    tb = _round_up(pl.cdiv(B128, num_tiles), LANE)
    B_pad = tb * num_tiles

    x_bf = x.astype(jnp.bfloat16)
    if B_pad != batch:
        x_bf = jnp.pad(x_bf, ((0, B_pad - batch), (0, 0)))

    args = [x_bf, params["w_first"]]
    in_specs = [
        pl.BlockSpec((tb, in_features), lambda i: (i, 0)),    # activations: batch-tiled, feature dim unpadded
        pl.BlockSpec((in_features, D), lambda i: (0, 0)),     # resident weights/biases below
    ]
    if num_hidden > 1:
        args.append(params["w_hid"])
        in_specs.append(pl.BlockSpec((num_hidden - 1, D, D), lambda i: (0, 0, 0)))
    args += [params["b_hid"], params["w_last_b"], params["b_last"]]
    in_specs += [
        pl.BlockSpec((num_hidden, 1, D), lambda i: (0, 0, 0)),
        pl.BlockSpec((D, LANE), lambda i: (0, 0)),
        pl.BlockSpec(memory_space=pltpu.MemorySpace.SMEM),    # scalar last-layer bias
    ]

    out = pl.pallas_call(
        _make_mlp_kernel(num_hidden, tb, D),
        out_shape=jax.ShapeDtypeStruct((num_tiles, tb // LANE, LANE), jnp.float32),
        grid=(num_tiles,),
        in_specs=in_specs,
        out_specs=pl.BlockSpec((1, tb // LANE, LANE), lambda i: (i, 0, 0)),
        compiler_params=pltpu.CompilerParams(
            dimension_semantics=("parallel",),
        ),
    )(*args)

    # out[g, i, c] = probability for batch row g*tb + i*128 + c -> row-major flatten.
    return out.reshape(-1)[:batch].reshape(batch, output_size)


def reference_forward(x, layers):
    """Pure-JAX f32 reference (unpadded math, same bf16-rounded weights)."""
    h = x.astype(jnp.float32)
    for i, (w, b) in enumerate(layers):
        h = h @ w + b
        if i < len(layers) - 1:
            h = jnp.maximum(h, 0.0)
    return jax.nn.sigmoid(h)


if __name__ == "__main__":
    input_size = 16
    hidden_size = 32
    hidden_layers = 2
    output_size = 1

    key = jax.random.PRNGKey(0)
    key, kx, kp = jax.random.split(key, 3)
    params, layers = init_params(kp, input_size, hidden_size, hidden_layers, output_size)

    # Small single-tile case.
    batch = 8
    x = jax.random.normal(kx, (batch, input_size), jnp.float32)
    out = jax.block_until_ready(binary_classifier_forward(x, params))
    ref = reference_forward(x, layers)
    assert out.shape == (batch, output_size)
    assert jnp.allclose(out, ref, atol=2e-2, rtol=2e-2), (out, ref)

    # Multi-tile case (exercises the >=2-step batch grid and ragged batch pad).
    key, kx2 = jax.random.split(key)
    batch2 = 300
    x2 = jax.random.normal(kx2, (batch2, input_size), jnp.float32)
    out2 = jax.block_until_ready(binary_classifier_forward(x2, params))
    ref2 = reference_forward(x2, layers)
    assert out2.shape == (batch2, output_size)
    assert jnp.allclose(out2, ref2, atol=2e-2, rtol=2e-2)

    print("KERNEL_OK")
</pallas_src>

<mosaic_0001>
module attributes {stable_mosaic.version = 11 : i64} {
  func.func @kernel(%arg0: i32, %arg1: memref<128x16xbf16, #tpu.memory_space<vmem>>, %arg2: memref<16x128xbf16, #tpu.memory_space<vmem>>, %arg3: memref<1x128x128xbf16, #tpu.memory_space<vmem>>, %arg4: memref<2x1x128xf32, #tpu.memory_space<vmem>>, %arg5: memref<128x128xbf16, #tpu.memory_space<vmem>>, %arg6: memref<1xf32, #tpu.memory_space<smem>>, %arg7: memref<1x1x128xf32, #tpu.memory_space<vmem>>) attributes {dimension_semantics = [#tpu.dimension_semantics<parallel>], iteration_bounds = array<i64: 1>, scalar_prefetch = 0 : i64, scratch_operands = 0 : i64, tpu.core_type = #tpu.core_type<tc>, window_params = [{transform_indices = @transform_0, window_bounds = array<i64: 128, 16>}, {pipeline_mode = #tpu.pipeline_mode<synchronous>, transform_indices = @transform_1, window_bounds = array<i64: 16, 128>}, {pipeline_mode = #tpu.pipeline_mode<synchronous>, transform_indices = @transform_2, window_bounds = array<i64: 1, 128, 128>}, {pipeline_mode = #tpu.pipeline_mode<synchronous>, transform_indices = @transform_3, window_bounds = array<i64: 2, 1, 128>}, {pipeline_mode = #tpu.pipeline_mode<synchronous>, transform_indices = @transform_4, window_bounds = array<i64: 128, 128>}, {transform_indices = @transform_5, window_bounds = array<i64: 1>}, {transform_indices = @transform_6, window_bounds = array<i64: 1, 1, 128>}]} {
    %c0 = arith.constant 0 : index
    %c0_0 = arith.constant 0 : index
    %0 = vector.load %arg1[%c0, %c0_0] : memref<128x16xbf16, #tpu.memory_space<vmem>>, vector<128x16xbf16>
    %c0_1 = arith.constant 0 : index
    %c0_2 = arith.constant 0 : index
    %1 = vector.load %arg2[%c0_1, %c0_2] : memref<16x128xbf16, #tpu.memory_space<vmem>>, vector<16x128xbf16>
    %cst = arith.constant dense<0.000000e+00> : vector<128x128xf32>
    %2 = tpu.matmul %0, %1, %cst {dimension_numbers = #tpu.dot_dimension_numbers<[1], [0], [0], [1], [0, 0, 1, 1], [], []>} : vector<128x16xbf16>, vector<16x128xbf16>, vector<128x128xf32> -> vector<128x128xf32>
    %c0_3 = arith.constant 0 : index
    %c0_4 = arith.constant 0 : index
    %c0_5 = arith.constant 0 : index
    %3 = vector.load %arg4[%c0_3, %c0_4, %c0_5] : memref<2x1x128xf32, #tpu.memory_space<vmem>>, vector<1x1x128xf32>
    %4 = vector.shape_cast %3 : vector<1x1x128xf32> to vector<1x128xf32>
    %5 = vector.broadcast %4 : vector<1x128xf32> to vector<128x128xf32>
    %6 = arith.addf %2, %5 : vector<128x128xf32>
    %cst_6 = arith.constant 0.000000e+00 : f32
    %7 = vector.broadcast %cst_6 : f32 to vector<128x128xf32>
    %8 = arith.maximumf %6, %7 : vector<128x128xf32>
    %9 = arith.truncf %8 : vector<128x128xf32> to vector<128x128xbf16>
    %c0_7 = arith.constant 0 : index
    %c0_8 = arith.constant 0 : index
    %c0_9 = arith.constant 0 : index
    %10 = vector.load %arg3[%c0_7, %c0_8, %c0_9] : memref<1x128x128xbf16, #tpu.memory_space<vmem>>, vector<1x128x128xbf16>
    %11 = vector.shape_cast %10 : vector<1x128x128xbf16> to vector<128x128xbf16>
    %cst_10 = arith.constant dense<0.000000e+00> : vector<128x128xf32>
    %12 = tpu.matmul %9, %11, %cst_10 {dimension_numbers = #tpu.dot_dimension_numbers<[1], [0], [0], [1], [0, 0, 1, 1], [], []>} : vector<128x128xbf16>, vector<128x128xbf16>, vector<128x128xf32> -> vector<128x128xf32>
    %c1 = arith.constant 1 : index
    %c0_11 = arith.constant 0 : index
    %c0_12 = arith.constant 0 : index
    %13 = vector.load %arg4[%c1, %c0_11, %c0_12] : memref<2x1x128xf32, #tpu.memory_space<vmem>>, vector<1x1x128xf32>
    %14 = vector.shape_cast %13 : vector<1x1x128xf32> to vector<1x128xf32>
    %15 = vector.broadcast %14 : vector<1x128xf32> to vector<128x128xf32>
    %16 = arith.addf %12, %15 : vector<128x128xf32>
    %cst_13 = arith.constant 0.000000e+00 : f32
    %17 = vector.broadcast %cst_13 : f32 to vector<128x128xf32>
    %18 = arith.maximumf %16, %17 : vector<128x128xf32>
    %19 = arith.truncf %18 : vector<128x128xf32> to vector<128x128xbf16>
    %c0_14 = arith.constant 0 : index
    %c0_15 = arith.constant 0 : index
    %20 = vector.load %arg5[%c0_14, %c0_15] : memref<128x128xbf16, #tpu.memory_space<vmem>>, vector<128x128xbf16>
    %cst_16 = arith.constant dense<0.000000e+00> : vector<128x128xf32>
    %21 = tpu.matmul %19, %20, %cst_16 {dimension_numbers = #tpu.dot_dimension_numbers<[1], [0], [0], [1], [0, 0, 1, 1], [], []>} : vector<128x128xbf16>, vector<128x128xbf16>, vector<128x128xf32> -> vector<128x128xf32>
    %22 = vector.shape_cast %21 : vector<128x128xf32> to vector<1x128x128xf32>
    %23 = tpu.iota {dimensions = array<i32: 0>} : vector<128x128xi32>
    %24 = tpu.iota {dimensions = array<i32: 1>} : vector<128x128xi32>
    %25 = arith.cmpi eq, %23, %24 : vector<128x128xi32>
    %26 = arith.extui %25 : vector<128x128xi1> to vector<128x128xi32>
    %27 = arith.sitofp %26 : vector<128x128xi32> to vector<128x128xf32>
    %28 = vector.shape_cast %27 : vector<128x128xf32> to vector<1x128x128xf32>
    %29 = arith.mulf %22, %28 : vector<1x128x128xf32>
    %cst_17 = arith.constant dense<0.000000e+00> : vector<1x128xf32>
    %30 = vector.multi_reduction <add>, %29, %cst_17 [1] : vector<1x128x128xf32> to vector<1x128xf32>
    %c0_18 = arith.constant 0 : index
    %31 = memref.load %arg6[%c0_18] : memref<1xf32, #tpu.memory_space<smem>>
    %32 = vector.broadcast %31 : f32 to vector<1x128xf32>
    %33 = arith.addf %30, %32 : vector<1x128xf32>
    %34 = arith.negf %33 : vector<1x128xf32>
    %35 = math.exp %34 : vector<1x128xf32>
    %cst_19 = arith.constant 1.000000e+00 : f32
    %36 = vector.broadcast %cst_19 : f32 to vector<1x128xf32>
    %37 = arith.addf %36, %35 : vector<1x128xf32>
    %38 = arith.divf %36, %37 : vector<1x128xf32>
    %c0_20 = arith.constant 0 : index
    %c0_21 = arith.constant 0 : index
    %c0_22 = arith.constant 0 : index
    %39 = vector.load %arg7[%c0_20, %c0_21, %c0_22] : memref<1x1x128xf32, #tpu.memory_space<vmem>>, vector<1x1x128xf32>
    %40 = vector.shape_cast %39 : vector<1x1x128xf32> to vector<1x128xf32>
    %41 = vector.shape_cast %38 : vector<1x128xf32> to vector<1x1x128xf32>
    tpu.vector_store %arg7[%c0_20, %c0_21, %c0_22], %41 {strides = array<i32>} : memref<1x1x128xf32, #tpu.memory_space<vmem>>, vector<1x1x128xf32>,
    return
  }
  func.func @transform_0(%arg0: i32) -> (i32, i32) {
    %c0_i32 = arith.constant 0 : i32
    %c0_i32_0 = arith.constant 0 : i32
    return %arg0, %c0_i32 : i32, i32
  }
  func.func @transform_1(%arg0: i32) -> (i32, i32) {
    %c0_i32 = arith.constant 0 : i32
    %c0_i32_0 = arith.constant 0 : i32
    %c0_i32_1 = arith.constant 0 : i32
    return %c0_i32, %c0_i32_0 : i32, i32
  }
  func.func @transform_2(%arg0: i32) -> (i32, i32, i32) {
    %c0_i32 = arith.constant 0 : i32
    %c0_i32_0 = arith.constant 0 : i32
    %c0_i32_1 = arith.constant 0 : i32
    %c0_i32_2 = arith.constant 0 : i32
    return %c0_i32, %c0_i32_0, %c0_i32_1 : i32, i32, i32
  }
  func.func @transform_3(%arg0: i32) -> (i32, i32, i32) {
    %c0_i32 = arith.constant 0 : i32
    %c0_i32_0 = arith.constant 0 : i32
    %c0_i32_1 = arith.constant 0 : i32
    %c0_i32_2 = arith.constant 0 : i32
    return %c0_i32, %c0_i32_0, %c0_i32_1 : i32, i32, i32
  }
  func.func @transform_4(%arg0: i32) -> (i32, i32) {
    %c0_i32 = arith.constant 0 : i32
    %c0_i32_0 = arith.constant 0 : i32
    %c0_i32_1 = arith.constant 0 : i32
    return %c0_i32, %c0_i32_0 : i32, i32
  }
  func.func @transform_5(%arg0: i32) -> i32 {
    %c0_i32 = arith.constant 0 : i32
    %c0_i32_0 = arith.constant 0 : i32
    return %c0_i32 : i32
  }
  func.func @transform_6(%arg0: i32) -> (i32, i32, i32) {
    %c0_i32 = arith.constant 0 : i32
    %c0_i32_0 = arith.constant 0 : i32
    %c0_i32_1 = arith.constant 0 : i32
    return %arg0, %c0_i32, %c0_i32_0 : i32, i32, i32
  }
}

</mosaic_0001>

<llo_original>
// kernel: tpu_custom_call.1
$region0: #{tpu_custom_call.1}
  #allocation0 [shape = 'u32[]', space=smem, size = 0x4, offset = 0x4, fixed_abs, tag = 'smem constant byte address 0x4 - core index']
  #allocation1 [shape = 'u32[144,128]{1,0:T(1,128)}', space=vmem, size = 0x12000, scoped, tag = 'internal scratch']
  #allocation2 [shape = 'f32[1]{0:T(128)S(6)}', space=smem, size = 0x200, scoped, tag = 'scoped memory for tpu_custom_call.1']
  %s0 = inlined_call_operand.vmem [shape: bf16[128,16], index: 0, kind: input, shape index: {}]
  %s1 = inlined_call_operand.vmem [shape: bf16[16,128], index: 1, kind: input, shape index: {}]
  %s2 = inlined_call_operand.vmem [shape: bf16[1,128,128], index: 2, kind: input, shape index: {}]
  %s3 = inlined_call_operand.vmem [shape: f32[2,1,128], index: 3, kind: input, shape index: {}]
  %s4 = inlined_call_operand.hbm [shape: bf16[128,128], index: 4, kind: input, shape index: {}]
  %s5 = inlined_call_operand.<no memory space> [shape: f32[1], index: 5, kind: input, shape index: {}]
  %s6 = inlined_call_operand.hbm [shape: f32[1,1,128], index: 6, kind: output, shape index: {}]
  %s7 = sld [smem:[#allocation0]]
  $region38: #{tpu_custom_call.1} parent=0
    _
  %s9 = ssub.s32 1, %s7
  %s10 = scalar_select 0, %s9, %s7
  %11 = sst [smem:[#allocation2]] %s5
  $region1: #{tpu_custom_call.1} parent=0
    #allocation3 [shape = 'u8[32768]{0}', space=vmem, size = 0x8000, scoped, tag = 'input window, operand 4, single buffered']
    #allocation4 [shape = 's32[1]{0}', space=sflag, size = 0x4, scoped, tag = 'scoped memory for tpu_custom_call.1']
    #allocation5 [shape = 's32[1]{0}', space=sflag, size = 0x4, scoped, tag = 'scoped memory for tpu_custom_call.1']
    #allocation6 [shape = 'u8[512]{0}', space=vmem, size = 0x400, scoped, tag = 'output window, operand 0, single buffered']
    %12 = vsyncpa [#allocation4], 0
    %13 = vsyncpa [#allocation5], 0
    // Predicated region
    $region2: #{tpu_custom_call.1} parent=1 // pred_check
      _
    $region3: #{tpu_custom_call.1} parent=1 // pred_check_branch
      %15 = sbr.rel (0) target = $region5
    $region4: #{tpu_custom_call.1} parent=1 // pred_region
      _
    $region5: #{tpu_custom_call.1} parent=1 // pred_fallthru
      _
    // Predicated region
    $region6: #{tpu_custom_call.1} parent=1 // pred_check
      _
    $region7: #{tpu_custom_call.1} parent=1 // pred_check_branch
      %17 = sbr.rel (0) target = $region9
    $region8: #{tpu_custom_call.1} parent=1 // pred_region
      _
    $region9: #{tpu_custom_call.1} parent=1 // pred_fallthru
      _
    // Predicated region
    $region10: #{tpu_custom_call.1} parent=1 // pred_check
      _
    $region11: #{tpu_custom_call.1} parent=1 // pred_check_branch
      %19 = sbr.rel (0) target = $region13
    $region12: #{tpu_custom_call.1} parent=1 // pred_region
      _
    $region13: #{tpu_custom_call.1} parent=1 // pred_fallthru
      _
    // Predicated region
    $region14: #{tpu_custom_call.1} parent=1 // pred_check
      _
    $region15: #{tpu_custom_call.1} parent=1 // pred_check_branch
      %21 = sbr.rel (0) target = $region17
    $region16: #{tpu_custom_call.1} parent=1 // pred_region
      _
    $region17: #{tpu_custom_call.1} parent=1 // pred_fallthru
      _
    // Predicated region
    $region18: #{tpu_custom_call.1} parent=1 // pred_check
      _
    $region19: #{tpu_custom_call.1} parent=1 // pred_check_branch
      %23 = sbr.rel (0) target = $region21
    $region20: #{tpu_custom_call.1} parent=1 // pred_region
      %s25 = ssub.s32 1024, 1024
      %26 = vsyncadd [#allocation4], %s25
      %s27 = sshll.u32 [#allocation3], 4
      %s28 = int_to_ptr.vmem [resolvable:$true] %s27
      %33 = dma.hbm_to_vmem [thread:$0]  %s4, 1024, %s28, [#allocation4], 64, 64, 4
    $region21: #{tpu_custom_call.1} parent=1 // pred_fallthru
      _
    // Predicated region
    $region22: #{tpu_custom_call.1} parent=1 // pred_check
      _
    $region23: #{tpu_custom_call.1} parent=1 // pred_check_branch
      %35 = sbr.rel (0) target = $region25
    $region24: #{tpu_custom_call.1} parent=1 // pred_region
      _
    $region25: #{tpu_custom_call.1} parent=1 // pred_fallthru
      _
    // Predicated region
    $region26: #{tpu_custom_call.1} parent=1 // pred_check
      _
    $region27: #{tpu_custom_call.1} parent=1 // pred_check_branch
      %37 = sbr.rel (0) target = $region29
    $region28: #{tpu_custom_call.1} parent=1 // pred_region
      %38 = dma.done [#allocation4], 1024
    $region29: #{tpu_custom_call.1} parent=1 // pred_fallthru
      _
    %v40 = vld [vmem:[%s0] sm:$0xf]
    %v41 = vld [vmem:[%s0 + $0x4] sm:$0xf]
    %v42 = vld [vmem:[%s0 + $0x8] sm:$0xf]
    %v43 = vld [vmem:[%s0 + $0xc] sm:$0xf]
    %v44 = vld [vmem:[%s0 + $0x10] sm:$0xf]
    %v45 = vld [vmem:[%s0 + $0x14] sm:$0xf]
    %v46 = vld [vmem:[%s0 + $0x18] sm:$0xf]
    %v47 = vld [vmem:[%s0 + $0x1c] sm:$0xf]
    %v48 = vld [vmem:[%s0 + $0x20] sm:$0xf]
    %v49 = vld [vmem:[%s0 + $0x24] sm:$0xf]
    %v50 = vld [vmem:[%s0 + $0x28] sm:$0xf]
    %v51 = vld [vmem:[%s0 + $0x2c] sm:$0xf]
    %v52 = vld [vmem:[%s0 + $0x30] sm:$0xf]
    %v53 = vld [vmem:[%s0 + $0x34] sm:$0xf]
    %v54 = vld [vmem:[%s0 + $0x38] sm:$0xf]
    %v55 = vld [vmem:[%s0 + $0x3c] sm:$0xf]
    %v56 = vld [vmem:[%s1] sm:$0xf]
    %v57 = vld [vmem:[%s1 + $0x4] sm:$0xf]
    %v58 = vld [vmem:[%s3] sm:$0x1]
    %v60 = vlaneseq
    %v61 = vshrl.u32 %v60, 7
    %v62 = vsub.s32 0, %v61
    %v63 = vrot.slane %v58, %v62
    %v81 = vunpack.c.l.b16 %v40
    %v82 = vunpack.c.l.b16 %v41
    %v83 = vunpack.c.l.b16 %v42
    %v84 = vunpack.c.l.b16 %v43
    %v85 = vunpack.c.l.b16 %v44
    %v86 = vunpack.c.l.b16 %v45
    %v87 = vunpack.c.l.b16 %v46
    %v88 = vunpack.c.l.b16 %v47
    %v89 = vunpack.c.l.b16 %v48
    %v90 = vunpack.c.l.b16 %v49
    %v91 = vunpack.c.l.b16 %v50
    %v92 = vunpack.c.l.b16 %v51
    %v93 = vunpack.c.l.b16 %v52
    %v94 = vunpack.c.l.b16 %v53
    %v95 = vunpack.c.l.b16 %v54
    %v96 = vunpack.c.l.b16 %v55
    %v97 = vpack.c.b16 %v82, %v81
    %v98 = vpack.c.b16 %v84, %v83
    %v99 = vpack.c.b16 %v86, %v85
    %v100 = vpack.c.b16 %v88, %v87
    %v101 = vpack.c.b16 %v90, %v89
    %v102 = vpack.c.b16 %v92, %v91
    %v103 = vpack.c.b16 %v94, %v93
    %v104 = vpack.c.b16 %v96, %v95
    %v107 = vunpack.c.l.b16 %v56
    %v108 = vunpack.c.l.b16 %v57
    %v109 = vpack.c.b16 %v108, %v107
    %vm111 = vcmask 130048
    %v113 = vsel %vm111, %v97, 0
    %v116 = vsel %vm111, %v98, 0
    %v119 = vsel %vm111, %v99, 0
    %v122 = vsel %vm111, %v100, 0
    %v125 = vsel %vm111, %v101, 0
    %v128 = vsel %vm111, %v102, 0
    %v131 = vsel %vm111, %v103, 0
    %v134 = vsel %vm111, %v104, 0
    %136 = vmatprep.subr.bf16.mxu0 0
    %137 = vmatpush1.bf16.msra.mxu0 %v109
    %138 = vmatprep.subr.bf16.mxu0 0
    %139 = vmatpush1.bf16.msra.mxu0 0
    %140 = vmatprep.subr.bf16.mxu0 0
    %141 = vmatpush1.bf16.msra.mxu0 0
    %142 = vmatprep.subr.bf16.mxu0 0
    %143 = vmatpush1.bf16.msra.mxu0 0
    %144 = vmatprep.subr.bf16.mxu0 0
    %145 = vmatpush1.bf16.msra.mxu0 0
    %146 = vmatprep.subr.bf16.mxu0 0
    %147 = vmatpush1.bf16.msra.mxu0 0
    %148 = vmatprep.subr.bf16.mxu0 0
    %149 = vmatpush1.bf16.msra.mxu0 0
    %150 = vmatprep.subr.bf16.mxu0 0
    %151 = vmatpush1.bf16.msra.mxu0 0
    %152 = vmatprep.subr.bf16.mxu0 0
    %153 = vmatpush1.bf16.msra.mxu0 0
    %154 = vmatprep.subr.bf16.mxu0 0
    %155 = vmatpush1.bf16.msra.mxu0 0
    %156 = vmatprep.subr.bf16.mxu0 0
    %157 = vmatpush1.bf16.msra.mxu0 0
    %158 = vmatprep.subr.bf16.mxu0 0
    %159 = vmatpush1.bf16.msra.mxu0 0
    %160 = vmatprep.subr.bf16.mxu0 0
    %161 = vmatpush1.bf16.msra.mxu0 0
    %162 = vmatprep.subr.bf16.mxu0 0
    %163 = vmatpush1.bf16.msra.mxu0 0
    %164 = vmatprep.subr.bf16.mxu0 0
    %165 = vmatpush1.bf16.msra.mxu0 0
    %166 = vmatprep.subr.bf16.mxu0 0
    %167 = vmatpush1.bf16.msra.mxu0 0
    %168 = vmatprep.mubr.bf16.mxu0 0
    %169 = vmatmul.mubr.bf16.gmra.mrb[0].mxu0 %v113
    %v170 = vpop.f32.mrb[0].mxu0
    %v171 = vadd.f32 %v63, %v170
    %v172 = vpop.f32.mrb[0].mxu0
    %v173 = vpop.f32.mrb[0].mxu0
    %v174 = vadd.f32 %v63, %v173
    %v175 = vpop.f32.mrb[0].mxu0
    %176 = vmatprep.mubr.bf16.mxu0 0
    %177 = vmatmul.mubr.bf16.gmra.mrb[0].mxu0 %v116
    %v178 = vpop.f32.mrb[0].mxu0
    %v179 = vadd.f32 %v63, %v178
    %v180 = vpop.f32.mrb[0].mxu0
    %v181 = vpop.f32.mrb[0].mxu0
    %v182 = vadd.f32 %v63, %v181
    %v183 = vpop.f32.mrb[0].mxu0
    %184 = vmatprep.mubr.bf16.mxu0 0
    %185 = vmatmul.mubr.bf16.gmra.mrb[0].mxu0 %v119
    %v186 = vpop.f32.mrb[0].mxu0
    %v187 = vadd.f32 %v63, %v186
    %v188 = vpop.f32.mrb[0].mxu0
    %v189 = vpop.f32.mrb[0].mxu0
    %v190 = vadd.f32 %v63, %v189
    %v191 = vpop.f32.mrb[0].mxu0
    %192 = vmatprep.mubr.bf16.mxu0 0
    %193 = vmatmul.mubr.bf16.gmra.mrb[0].mxu0 %v122
    %v194 = vpop.f32.mrb[0].mxu0
    %v195 = vadd.f32 %v63, %v194
    %v196 = vpop.f32.mrb[0].mxu0
    %v197 = vpop.f32.mrb[0].mxu0
    %v198 = vadd.f32 %v63, %v197
    %v199 = vpop.f32.mrb[0].mxu0
    %200 = vmatprep.mubr.bf16.mxu0 0
    %201 = vmatmul.mubr.bf16.gmra.mrb[0].mxu0 %v125
    %v202 = vpop.f32.mrb[0].mxu0
    %v203 = vadd.f32 %v63, %v202
    %v204 = vpop.f32.mrb[0].mxu0
    %v205 = vpop.f32.mrb[0].mxu0
    %v206 = vadd.f32 %v63, %v205
    %v207 = vpop.f32.mrb[0].mxu0
    %208 = vmatprep.mubr.bf16.mxu0 0
    %209 = vmatmul.mubr.bf16.gmra.mrb[0].mxu0 %v128
    %v210 = vpop.f32.mrb[0].mxu0
    %v211 = vadd.f32 %v63, %v210
    %v212 = vpop.f32.mrb[0].mxu0
    %v213 = vpop.f32.mrb[0].mxu0
    %v214 = vadd.f32 %v63, %v213
    %v215 = vpop.f32.mrb[0].mxu0
    %216 = vmatprep.mubr.bf16.mxu0 0
    %217 = vmatmul.mubr.bf16.gmra.mrb[0].mxu0 %v131
    %v218 = vpop.f32.mrb[0].mxu0
    %v219 = vadd.f32 %v63, %v218
    %v220 = vpop.f32.mrb[0].mxu0
    %v221 = vpop.f32.mrb[0].mxu0
    %v222 = vadd.f32 %v63, %v221
    %v223 = vpop.f32.mrb[0].mxu0
    %224 = vmatprep.mubr.bf16.mxu0 0
    %225 = vmatmul.mubr.bf16.gmra.mrb[0].mxu0 %v134
    %v226 = vpop.f32.mrb[0].mxu0
    %v227 = vadd.f32 %v63, %v226
    %v228 = vpop.f32.mrb[0].mxu0
    %v229 = vpop.f32.mrb[0].mxu0
    %v230 = vadd.f32 %v63, %v229
    %v231 = vpop.f32.mrb[0].mxu0
    %232 = vdwg.mxu0
    %v233 = vmax.f32 %v171, 0.0
    %v234 = vmax.f32 %v174, 0.0
    %v235 = vmax.f32 %v179, 0.0
    %v236 = vmax.f32 %v182, 0.0
    %v237 = vmax.f32 %v187, 0.0
    %v238 = vmax.f32 %v190, 0.0
    %v239 = vmax.f32 %v195, 0.0
    %v240 = vmax.f32 %v198, 0.0
    %v241 = vmax.f32 %v203, 0.0
    %v242 = vmax.f32 %v206, 0.0
    %v243 = vmax.f32 %v211, 0.0
    %v244 = vmax.f32 %v214, 0.0
    %v245 = vmax.f32 %v219, 0.0
    %v246 = vmax.f32 %v222, 0.0
    %v247 = vmax.f32 %v227, 0.0
    %v248 = vmax.f32 %v230, 0.0
    %v249 = vpack.c.bf16 %v234, %v233
    %v250 = vpack.c.bf16 %v236, %v235
    %v251 = vpack.c.bf16 %v238, %v237
    %v252 = vpack.c.bf16 %v240, %v239
    %v253 = vpack.c.bf16 %v242, %v241
    %v254 = vpack.c.bf16 %v244, %v243
    %v255 = vpack.c.bf16 %v246, %v245
    %v256 = vpack.c.bf16 %v248, %v247
    %v257 = vld [vmem:[%s2] sm:$0xf]
    %v258 = vld [vmem:[%s2 + $0x4] sm:$0xf]
    %v259 = vld [vmem:[%s2 + $0x8] sm:$0xf]
    %v260 = vld [vmem:[%s2 + $0xc] sm:$0xf]
    %v261 = vld [vmem:[%s2 + $0x10] sm:$0xf]
    %v262 = vld [vmem:[%s2 + $0x14] sm:$0xf]
    %v263 = vld [vmem:[%s2 + $0x18] sm:$0xf]
    %v264 = vld [vmem:[%s2 + $0x1c] sm:$0xf]
    %v265 = vld [vmem:[%s2 + $0x20] sm:$0xf]
    %v266 = vld [vmem:[%s2 + $0x24] sm:$0xf]
    %v267 = vld [vmem:[%s2 + $0x28] sm:$0xf]
    %v268 = vld [vmem:[%s2 + $0x2c] sm:$0xf]
    %v269 = vld [vmem:[%s2 + $0x30] sm:$0xf]
    %v270 = vld [vmem:[%s2 + $0x34] sm:$0xf]
    %v271 = vld [vmem:[%s2 + $0x38] sm:$0xf]
    %v272 = vld [vmem:[%s2 + $0x3c] sm:$0xf]
    %s273 = scalar_lea.vmem %s3, 1
    %v274 = vld [vmem:[%s273] sm:$0x1]
    %v276 = vlaneseq
    %v277 = vshrl.u32 %v276, 7
    %v278 = vsub.s32 0, %v277
    %v279 = vrot.slane %v274, %v278
    %v297 = vunpack.c.l.b16 %v257
    %v298 = vunpack.c.l.b16 %v258
    %v299 = vunpack.c.l.b16 %v259
    %v300 = vunpack.c.l.b16 %v260
    %v301 = vunpack.c.l.b16 %v261
    %v302 = vunpack.c.l.b16 %v262
    %v303 = vunpack.c.l.b16 %v263
    %v304 = vunpack.c.l.b16 %v264
    %v305 = vunpack.c.l.b16 %v265
    %v306 = vunpack.c.l.b16 %v266
    %v307 = vunpack.c.l.b16 %v267
    %v308 = vunpack.c.l.b16 %v268
    %v309 = vunpack.c.l.b16 %v269
    %v310 = vunpack.c.l.b16 %v270
    %v311 = vunpack.c.l.b16 %v271
    %v312 = vunpack.c.l.b16 %v272
    %v313 = vpack.c.b16 %v298, %v297
    %v314 = vpack.c.b16 %v300, %v299
    %v315 = vpack.c.b16 %v302, %v301
    %v316 = vpack.c.b16 %v304, %v303
    %v317 = vpack.c.b16 %v306, %v305
    %v318 = vpack.c.b16 %v308, %v307
    %v319 = vpack.c.b16 %v310, %v309
    %v320 = vpack.c.b16 %v312, %v311
    %329 = vmatprep.subr.bf16.mxu0 0
    %330 = vmatpush1.bf16.msra.mxu0 %v313
    %331 = vmatprep.subr.bf16.mxu0 0
    %332 = vmatpush1.bf16.msra.mxu0 %v314
    %333 = vmatprep.subr.bf16.mxu0 0
    %334 = vmatpush1.bf16.msra.mxu0 %v315
    %335 = vmatprep.subr.bf16.mxu0 0
    %336 = vmatpush1.bf16.msra.mxu0 %v316
    %337 = vmatprep.subr.bf16.mxu0 0
    %338 = vmatpush1.bf16.msra.mxu0 %v317
    %339 = vmatprep.subr.bf16.mxu0 0
    %340 = vmatpush1.bf16.msra.mxu0 %v318
    %341 = vmatprep.subr.bf16.mxu0 0
    %342 = vmatpush1.bf16.msra.mxu0 %v319
    %343 = vmatprep.subr.bf16.mxu0 0
    %344 = vmatpush1.bf16.msra.mxu0 %v320
    %345 = vmatprep.subr.bf16.mxu0 0
    %346 = vmatpush1.bf16.msra.mxu0 0
    %347 = vmatprep.subr.bf16.mxu0 0
    %348 = vmatpush1.bf16.msra.mxu0 0
    %349 = vmatprep.subr.bf16.mxu0 0
    %350 = vmatpush1.bf16.msra.mxu0 0
    %351 = vmatprep.subr.bf16.mxu0 0
    %352 = vmatpush1.bf16.msra.mxu0 0
    %353 = vmatprep.subr.bf16.mxu0 0
    %354 = vmatpush1.bf16.msra.mxu0 0
    %355 = vmatprep.subr.bf16.mxu0 0
    %356 = vmatpush1.bf16.msra.mxu0 0
    %357 = vmatprep.subr.bf16.mxu0 0
    %358 = vmatpush1.bf16.msra.mxu0 0
    %359 = vmatprep.subr.bf16.mxu0 0
    %360 = vmatpush1.bf16.msra.mxu0 0
    %361 = vmatprep.mubr.bf16.mxu0 0
    %362 = vmatmul.mubr.bf16.gmra.mrb[0].mxu0 %v249
    %v363 = vpop.f32.mrb[0].mxu0
    %v364 = vadd.f32 %v279, %v363
    %v365 = vpop.f32.mrb[0].mxu0
    %v366 = vpop.f32.mrb[0].mxu0
    %v367 = vadd.f32 %v279, %v366
    %v368 = vpop.f32.mrb[0].mxu0
    %369 = vmatprep.mubr.bf16.mxu0 0
    %370 = vmatmul.mubr.bf16.gmra.mrb[0].mxu0 %v250
    %v371 = vpop.f32.mrb[0].mxu0
    %v372 = vadd.f32 %v279, %v371
    %v373 = vpop.f32.mrb[0].mxu0
    %v374 = vpop.f32.mrb[0].mxu0
    %v375 = vadd.f32 %v279, %v374
    %v376 = vpop.f32.mrb[0].mxu0
    %377 = vmatprep.mubr.bf16.mxu0 0
    %378 = vmatmul.mubr.bf16.gmra.mrb[0].mxu0 %v251
    %v379 = vpop.f32.mrb[0].mxu0
    %v380 = vadd.f32 %v279, %v379
    %v381 = vpop.f32.mrb[0].mxu0
    %v382 = vpop.f32.mrb[0].mxu0
    %v383 = vadd.f32 %v279, %v382
    %v384 = vpop.f32.mrb[0].mxu0
    %385 = vmatprep.mubr.bf16.mxu0 0
    %386 = vmatmul.mubr.bf16.gmra.mrb[0].mxu0 %v252
    %v387 = vpop.f32.mrb[0].mxu0
    %v388 = vadd.f32 %v279, %v387
    %v389 = vpop.f32.mrb[0].mxu0
    %v390 = vpop.f32.mrb[0].mxu0
    %v391 = vadd.f32 %v279, %v390
    %v392 = vpop.f32.mrb[0].mxu0
    %393 = vmatprep.mubr.bf16.mxu0 0
    %394 = vmatmul.mubr.bf16.gmra.mrb[0].mxu0 %v253
    %v395 = vpop.f32.mrb[0].mxu0
    %v396 = vadd.f32 %v279, %v395
    %v397 = vpop.f32.mrb[0].mxu0
    %v398 = vpop.f32.mrb[0].mxu0
    %v399 = vadd.f32 %v279, %v398
    %v400 = vpop.f32.mrb[0].mxu0
    %401 = vmatprep.mubr.bf16.mxu0 0
    %402 = vmatmul.mubr.bf16.gmra.mrb[0].mxu0 %v254
    %v403 = vpop.f32.mrb[0].mxu0
    %v404 = vadd.f32 %v279, %v403
    %v405 = vpop.f32.mrb[0].mxu0
    %v406 = vpop.f32.mrb[0].mxu0
    %v407 = vadd.f32 %v279, %v406
    %v408 = vpop.f32.mrb[0].mxu0
    %409 = vmatprep.mubr.bf16.mxu0 0
    %410 = vmatmul.mubr.bf16.gmra.mrb[0].mxu0 %v255
    %v411 = vpop.f32.mrb[0].mxu0
    %v412 = vadd.f32 %v279, %v411
    %v413 = vpop.f32.mrb[0].mxu0
    %v414 = vpop.f32.mrb[0].mxu0
    %v415 = vadd.f32 %v279, %v414
    %v416 = vpop.f32.mrb[0].mxu0
    %417 = vmatprep.mubr.bf16.mxu0 0
    %418 = vmatmul.mubr.bf16.gmra.mrb[0].mxu0 %v256
    %v419 = vpop.f32.mrb[0].mxu0
    %v420 = vadd.f32 %v279, %v419
    %v421 = vpop.f32.mrb[0].mxu0
    %v422 = vpop.f32.mrb[0].mxu0
    %v423 = vadd.f32 %v279, %v422
    %v424 = vpop.f32.mrb[0].mxu0
    %425 = vdwg.mxu0
    %v426 = vmax.f32 %v364, 0.0
    %v427 = vmax.f32 %v367, 0.0
    %v428 = vmax.f32 %v372, 0.0
    %v429 = vmax.f32 %v375, 0.0
    %v430 = vmax.f32 %v380, 0.0
    %v431 = vmax.f32 %v383, 0.0
    %v432 = vmax.f32 %v388, 0.0
    %v433 = vmax.f32 %v391, 0.0
    %v434 = vmax.f32 %v396, 0.0
    %v435 = vmax.f32 %v399, 0.0
    %v436 = vmax.f32 %v404, 0.0
    %v437 = vmax.f32 %v407, 0.0
    %v438 = vmax.f32 %v412, 0.0
    %v439 = vmax.f32 %v415, 0.0
    %v440 = vmax.f32 %v420, 0.0
    %v441 = vmax.f32 %v423, 0.0
    %v442 = vpack.c.bf16 %v427, %v426
    %v443 = vpack.c.bf16 %v429, %v428
    %v444 = vpack.c.bf16 %v431, %v430
    %v445 = vpack.c.bf16 %v433, %v432
    %v446 = vpack.c.bf16 %v435, %v434
    %v447 = vpack.c.bf16 %v437, %v436
    %v448 = vpack.c.bf16 %v439, %v438
    %v449 = vpack.c.bf16 %v441, %v440
    %v450 = vld [vmem:[#allocation3] sm:$0xf]
    %v451 = vld [vmem:[#allocation3 + $0x4] sm:$0xf]
    %v452 = vld [vmem:[#allocation3 + $0x8] sm:$0xf]
    %v453 = vld [vmem:[#allocation3 + $0xc] sm:$0xf]
    %v454 = vld [vmem:[#allocation3 + $0x10] sm:$0xf]
    %v455 = vld [vmem:[#allocation3 + $0x14] sm:$0xf]
    %v456 = vld [vmem:[#allocation3 + $0x18] sm:$0xf]
    %v457 = vld [vmem:[#allocation3 + $0x1c] sm:$0xf]
    %v458 = vld [vmem:[#allocation3 + $0x20] sm:$0xf]
    %v459 = vld [vmem:[#allocation3 + $0x24] sm:$0xf]
    %v460 = vld [vmem:[#allocation3 + $0x28] sm:$0xf]
    %v461 = vld [vmem:[#allocation3 + $0x2c] sm:$0xf]
    %v462 = vld [vmem:[#allocation3 + $0x30] sm:$0xf]
    %v463 = vld [vmem:[#allocation3 + $0x34] sm:$0xf]
    %v464 = vld [vmem:[#allocation3 + $0x38] sm:$0xf]
    %v465 = vld [vmem:[#allocation3 + $0x3c] sm:$0xf]
    %v482 = vunpack.c.l.b16 %v450
    %v483 = vunpack.c.l.b16 %v451
    %v484 = vunpack.c.l.b16 %v452
    %v485 = vunpack.c.l.b16 %v453
    %v486 = vunpack.c.l.b16 %v454
    %v487 = vunpack.c.l.b16 %v455
    %v488 = vunpack.c.l.b16 %v456
    %v489 = vunpack.c.l.b16 %v457
    %v490 = vunpack.c.l.b16 %v458
    %v491 = vunpack.c.l.b16 %v459
    %v492 = vunpack.c.l.b16 %v460
    %v493 = vunpack.c.l.b16 %v461
    %v494 = vunpack.c.l.b16 %v462
    %v495 = vunpack.c.l.b16 %v463
    %v496 = vunpack.c.l.b16 %v464
    %v497 = vunpack.c.l.b16 %v465
    %v498 = vpack.c.b16 %v483, %v482
    %v499 = vpack.c.b16 %v485, %v484
    %v500 = vpack.c.b16 %v487, %v486
    %v501 = vpack.c.b16 %v489, %v488
    %v502 = vpack.c.b16 %v491, %v490
    %v503 = vpack.c.b16 %v493, %v492
    %v504 = vpack.c.b16 %v495, %v494
    %v505 = vpack.c.b16 %v497, %v496
    %514 = vmatprep.subr.bf16.mxu0 0
    %515 = vmatpush1.bf16.msra.mxu0 %v498
    %516 = vmatprep.subr.bf16.mxu0 0
    %517 = vmatpush1.bf16.msra.mxu0 %v499
    %518 = vmatprep.subr.bf16.mxu0 0
    %519 = vmatpush1.bf16.msra.mxu0 %v500
    %520 = vmatprep.subr.bf16.mxu0 0
    %521 = vmatpush1.bf16.msra.mxu0 %v501
    %522 = vmatprep.subr.bf16.mxu0 0
    %523 = vmatpush1.bf16.msra.mxu0 %v502
    %524 = vmatprep.subr.bf16.mxu0 0
    %525 = vmatpush1.bf16.msra.mxu0 %v503
    %526 = vmatprep.subr.bf16.mxu0 0
    %527 = vmatpush1.bf16.msra.mxu0 %v504
    %528 = vmatprep.subr.bf16.mxu0 0
    %529 = vmatpush1.bf16.msra.mxu0 %v505
    %530 = vmatprep.subr.bf16.mxu0 0
    %531 = vmatpush1.bf16.msra.mxu0 0
    %532 = vmatprep.subr.bf16.mxu0 0
    %533 = vmatpush1.bf16.msra.mxu0 0
    %534 = vmatprep.subr.bf16.mxu0 0
    %535 = vmatpush1.bf16.msra.mxu0 0
    %536 = vmatprep.subr.bf16.mxu0 0
    %537 = vmatpush1.bf16.msra.mxu0 0
    %538 = vmatprep.subr.bf16.mxu0 0
    %539 = vmatpush1.bf16.msra.mxu0 0
    %540 = vmatprep.subr.bf16.mxu0 0
    %541 = vmatpush1.bf16.msra.mxu0 0
    %542 = vmatprep.subr.bf16.mxu0 0
    %543 = vmatpush1.bf16.msra.mxu0 0
    %544 = vmatprep.subr.bf16.mxu0 0
    %545 = vmatpush1.bf16.msra.mxu0 0
    %546 = vmatprep.mubr.bf16.mxu0 0
    %547 = vmatmul.mubr.bf16.gmra.mrb[0].mxu0 %v442
    %v548 = vpop.f32.mrb[0].mxu0
    %v549 = vadd.f32 0.0, %v548
    %v550 = vpop.f32.mrb[0].mxu0
    %v551 = vpop.f32.mrb[0].mxu0
    %v552 = vadd.f32 0.0, %v551
    %v553 = vpop.f32.mrb[0].mxu0
    %554 = vmatprep.mubr.bf16.mxu0 0
    %555 = vmatmul.mubr.bf16.gmra.mrb[0].mxu0 %v443
    %v556 = vpop.f32.mrb[0].mxu0
    %v557 = vadd.f32 0.0, %v556
    %v558 = vpop.f32.mrb[0].mxu0
    %v559 = vpop.f32.mrb[0].mxu0
    %v560 = vadd.f32 0.0, %v559
    %v561 = vpop.f32.mrb[0].mxu0
    %562 = vmatprep.mubr.bf16.mxu0 0
    %563 = vmatmul.mubr.bf16.gmra.mrb[0].mxu0 %v444
    %v564 = vpop.f32.mrb[0].mxu0
    %v565 = vadd.f32 0.0, %v564
    %v566 = vpop.f32.mrb[0].mxu0
    %v567 = vpop.f32.mrb[0].mxu0
    %v568 = vadd.f32 0.0, %v567
    %v569 = vpop.f32.mrb[0].mxu0
    %570 = vmatprep.mubr.bf16.mxu0 0
    %571 = vmatmul.mubr.bf16.gmra.mrb[0].mxu0 %v445
    %v572 = vpop.f32.mrb[0].mxu0
    %v573 = vadd.f32 0.0, %v572
    %v574 = vpop.f32.mrb[0].mxu0
    %v575 = vpop.f32.mrb[0].mxu0
    %v576 = vadd.f32 0.0, %v575
    %v577 = vpop.f32.mrb[0].mxu0
    %578 = vmatprep.mubr.bf16.mxu0 0
    %579 = vmatmul.mubr.bf16.gmra.mrb[0].mxu0 %v446
    %v580 = vpop.f32.mrb[0].mxu0
    %v581 = vadd.f32 0.0, %v580
    %v582 = vpop.f32.mrb[0].mxu0
    %v583 = vpop.f32.mrb[0].mxu0
    %v584 = vadd.f32 0.0, %v583
    %v585 = vpop.f32.mrb[0].mxu0
    %586 = vmatprep.mubr.bf16.mxu0 0
    %587 = vmatmul.mubr.bf16.gmra.mrb[0].mxu0 %v447
    %v588 = vpop.f32.mrb[0].mxu0
    %v589 = vadd.f32 0.0, %v588
    %v590 = vpop.f32.mrb[0].mxu0
    %v591 = vpop.f32.mrb[0].mxu0
    %v592 = vadd.f32 0.0, %v591
    %v593 = vpop.f32.mrb[0].mxu0
    %594 = vmatprep.mubr.bf16.mxu0 0
    %595 = vmatmul.mubr.bf16.gmra.mrb[0].mxu0 %v448
    %v596 = vpop.f32.mrb[0].mxu0
    %v597 = vadd.f32 0.0, %v596
    %v598 = vpop.f32.mrb[0].mxu0
    %v599 = vpop.f32.mrb[0].mxu0
    %v600 = vadd.f32 0.0, %v599
    %v601 = vpop.f32.mrb[0].mxu0
    %602 = vmatprep.mubr.bf16.mxu0 0
    %603 = vmatmul.mubr.bf16.gmra.mrb[0].mxu0 %v449
    %v604 = vpop.f32.mrb[0].mxu0
    %v605 = vadd.f32 0.0, %v604
    %v606 = vpop.f32.mrb[0].mxu0
    %v607 = vpop.f32.mrb[0].mxu0
    %v608 = vadd.f32 0.0, %v607
    %v609 = vpop.f32.mrb[0].mxu0
    %610 = vdwg.mxu0
    %v611 = vlaneseq
    %v612 = vshrl.u32 %v611, 7
    %v613 = vadd.s32 %v612, 8
    %v614 = vadd.s32 %v612, 16
    %v615 = vadd.s32 %v612, 24
    %v616 = vadd.s32 %v612, 32
    %v617 = vadd.s32 %v612, 40
    %v618 = vadd.s32 %v612, 48
    %v619 = vadd.s32 %v612, 56
    %v620 = vadd.s32 %v612, 64
    %v621 = vadd.s32 %v612, 72
    %v622 = vadd.s32 %v612, 80
    %v623 = vadd.s32 %v612, 88
    %v624 = vadd.s32 %v612, 96
    %v625 = vadd.s32 %v612, 104
    %v626 = vadd.s32 %v612, 112
    %v627 = vadd.s32 %v612, 120
    %v628 = vlaneseq
    %v629 = vand.u32 %v628, 127
    %vm630 = vcmp.eq.s32.totalorder %v612, %v629
    %vm631 = vcmp.eq.s32.totalorder %v613, %v629
    %vm632 = vcmp.eq.s32.totalorder %v614, %v629
    %vm633 = vcmp.eq.s32.totalorder %v615, %v629
    %vm634 = vcmp.eq.s32.totalorder %v616, %v629
    %vm635 = vcmp.eq.s32.totalorder %v617, %v629
    %vm636 = vcmp.eq.s32.totalorder %v618, %v629
    %vm637 = vcmp.eq.s32.totalorder %v619, %v629
    %vm638 = vcmp.eq.s32.totalorder %v620, %v629
    %vm639 = vcmp.eq.s32.totalorder %v621, %v629
    %vm640 = vcmp.eq.s32.totalorder %v622, %v629
    %vm641 = vcmp.eq.s32.totalorder %v623, %v629
    %vm642 = vcmp.eq.s32.totalorder %v624, %v629
    %vm643 = vcmp.eq.s32.totalorder %v625, %v629
    %vm644 = vcmp.eq.s32.totalorder %v626, %v629
    %vm645 = vcmp.eq.s32.totalorder %v627, %v629
    %v646 = vsel %vm630, 1, 0
    %v647 = vsel %vm631, 1, 0
    %v648 = vsel %vm632, 1, 0
    %v649 = vsel %vm633, 1, 0
    %v650 = vsel %vm634, 1, 0
    %v651 = vsel %vm635, 1, 0
    %v652 = vsel %vm636, 1, 0
    %v653 = vsel %vm637, 1, 0
    %v654 = vsel %vm638, 1, 0
    %v655 = vsel %vm639, 1, 0
    %v656 = vsel %vm640, 1, 0
    %v657 = vsel %vm641, 1, 0
    %v658 = vsel %vm642, 1, 0
    %v659 = vsel %vm643, 1, 0
    %v660 = vsel %vm644, 1, 0
    %v661 = vsel %vm645, 1, 0
    %v662 = vcvt.s32.f32 %v646
    %v663 = vcvt.s32.f32 %v647
    %v664 = vcvt.s32.f32 %v648
    %v665 = vcvt.s32.f32 %v649
    %v666 = vcvt.s32.f32 %v650
    %v667 = vcvt.s32.f32 %v651
    %v668 = vcvt.s32.f32 %v652
    %v669 = vcvt.s32.f32 %v653
    %v670 = vcvt.s32.f32 %v654
    %v671 = vcvt.s32.f32 %v655
    %v672 = vcvt.s32.f32 %v656
    %v673 = vcvt.s32.f32 %v657
    %v674 = vcvt.s32.f32 %v658
    %v675 = vcvt.s32.f32 %v659
    %v676 = vcvt.s32.f32 %v660
    %v677 = vcvt.s32.f32 %v661
    %v678 = vmul.f32 %v549, %v662
    %v679 = vmul.f32 %v552, %v663
    %v680 = vmul.f32 %v557, %v664
    %v681 = vmul.f32 %v560, %v665
    %v682 = vmul.f32 %v565, %v666
    %v683 = vmul.f32 %v568, %v667
    %v684 = vmul.f32 %v573, %v668
    %v685 = vmul.f32 %v576, %v669
    %v686 = vmul.f32 %v581, %v670
    %v687 = vmul.f32 %v584, %v671
    %v688 = vmul.f32 %v589, %v672
    %v689 = vmul.f32 %v592, %v673
    %v690 = vmul.f32 %v597, %v674
    %v691 = vmul.f32 %v600, %v675
    %v692 = vmul.f32 %v605, %v676
    %v693 = vmul.f32 %v608, %v677
    %v694 = vadd.f32 %v678, %v679
    %v695 = vadd.f32 %v694, %v680
    %v696 = vadd.f32 %v695, %v681
    %v697 = vadd.f32 %v696, %v682
    %v698 = vadd.f32 %v697, %v683
    %v699 = vadd.f32 %v698, %v684
    %v700 = vadd.f32 %v699, %v685
    %v701 = vadd.f32 %v700, %v686
    %v702 = vadd.f32 %v701, %v687
    %v703 = vadd.f32 %v702, %v688
    %v704 = vadd.f32 %v703, %v689
    %v705 = vadd.f32 %v704, %v690
    %v706 = vadd.f32 %v705, %v691
    %v707 = vadd.f32 %v706, %v692
    %v708 = vadd.f32 %v707, %v693
    %v709 = vrot.slane %v708, 4
    %v710 = vadd.f32 %v708, %v709
    %v711 = vrot.slane %v710, 2
    %v712 = vadd.f32 %v710, %v711
    %v713 = vrot.slane %v712, 1
    %v714 = vadd.f32 %v712, %v713
    %s715 = sld [smem:[#allocation2]]
    %v716 = vstv %s715
    %v717 = vadd.f32 %v714, %v716
    %v718 = vxor.u32 %v717, 2147483648
    %v719 = vmul.f32 %v718, 1.442695
    %v720 = vpow.pop %v719
    %v721 = vadd.f32 %v720, 1.0
    %v722 = vrcp.pop %v721
    %v723 = vmul.f32 1.0, %v722
    %724 = vst [vmem:[#allocation6] sm:$0x1] %v723
    // Predicated region
    $region30: #{tpu_custom_call.1} parent=1 // pred_check
      _
    $region31: #{tpu_custom_call.1} parent=1 // pred_check_branch
      %726 = sbr.rel (0) target = $region33
    $region32: #{tpu_custom_call.1} parent=1 // pred_region
      %s728 = ssub.s32 16, 16
      %729 = vsyncadd [#allocation5], %s728
      %s731 = sshll.u32 [#allocation6], 4
      %s732 = int_to_ptr.vmem [resolvable:$true] %s731
      %734 = dma.vmem_to_hbm [thread:$0]  %s732, 16, %s6, [#allocation5]
    $region33: #{tpu_custom_call.1} parent=1 // pred_fallthru
      _
    // Predicated region
    $region34: #{tpu_custom_call.1} parent=1 // pred_check
      _
    $region35: #{tpu_custom_call.1} parent=1 // pred_check_branch
      %736 = sbr.rel (0) target = $region37
    $region36: #{tpu_custom_call.1} parent=1 // pred_region
      %737 = dma.done [#allocation5], 16
    $region37: #{tpu_custom_call.1} parent=1 // pred_fallthru
      _
    %738 = vsyncpa [#allocation4], 1
    %739 = vsyncpa [#allocation5], 1

</llo_original>
